<compile_context>
chip_gen: v5e
topology: v5e:2x2
jax: 0.10.0
libtpu: 0.0.40
codegen_flags: <defaults>
</compile_context>

<pallas_src>
import jax
import jax.numpy as jnp
from jax.experimental import pallas as pl
from jax.experimental.pallas import tpu as pltpu

IN_FEATURES = 1024
OUT_FEATURES = 1


def svm_kernel(x_ref, w_ref, b_ref, o_ref):
    # x_ref: (TB, 1024) VMEM (streamed), w_ref: (1024, 1) VMEM (resident),
    # b_ref: (1, 1) SMEM scalar, o_ref: (TB, 1) VMEM.
    acc = jnp.dot(x_ref[...], w_ref[...], preferred_element_type=jnp.float32)
    o_ref[...] = (acc + b_ref[0, 0]).astype(o_ref.dtype)


def _round_up(n, m):
    return ((n + m - 1) // m) * m


def _device_defaults():
    """Pick (tile_b, vmem_limit_bytes, use_core_parallel) for this TPU gen."""
    try:
        kind = jax.devices()[0].device_kind.lower()
    except Exception:  # pragma: no cover - be conservative if query fails
        kind = ""
    if "v7" in kind or "tpu7" in kind:
        # v7x: 8-16 MiB tiles amortize the ~0.35 us per-step overhead at
        # ~3.2 TB/s; 2 x 16 MiB double-buffer needs an explicit VMEM limit.
        return 4096, 40 << 20, True
    if "v6" in kind:
        # v6e: 2 x 8 MiB double-buffer fits the 32 MiB default scoped VMEM.
        return 2048, None, False
    # v5e / v5p / v4 / unknown: 2 x 4 MiB fits v5e's 16 MiB default scope.
    return 1024, None, False


def svm_forward(x, w_t, b, *, tile_b=None):
    """x: (B, 1024) f32, w_t: (1024, 1) f32, b: (1, 1) f32 -> (B, 1) f32."""
    B = x.shape[0]
    default_tb, vmem_limit, core_parallel = _device_defaults()
    if tile_b is None:
        tile_b = default_tb

    # Batch tile: multiple of 8 (sublane granularity), no larger than needed
    # for this batch.  The array itself is NOT padded; Pallas masks the ragged
    # last block on writeback.
    tb = min(_round_up(max(int(tile_b), 8), 8), _round_up(max(B, 1), 8))
    num_tiles = pl.cdiv(B, tb)
    grid = (num_tiles,)

    if core_parallel and num_tiles >= 2:
        dim_sem = (pltpu.CORE_PARALLEL,)
    else:
        dim_sem = ("parallel",)

    out = pl.pallas_call(
        svm_kernel,
        out_shape=jax.ShapeDtypeStruct((B, OUT_FEATURES), x.dtype),
        grid_spec=pltpu.PrefetchScalarGridSpec(
            num_scalar_prefetch=0,
            grid=grid,
            in_specs=[
                # Streamed batch tile: double-buffered by the pipeliner.
                pl.BlockSpec((tb, IN_FEATURES), lambda i: (i, 0)),
                # Weight stays resident in VMEM across all grid steps.
                pl.BlockSpec((IN_FEATURES, OUT_FEATURES), lambda i: (0, 0)),
                # Bias as an SMEM scalar (no VMEM tile / extra DMA stream).
                pl.BlockSpec(memory_space=pltpu.MemorySpace.SMEM),
            ],
            out_specs=pl.BlockSpec((tb, OUT_FEATURES), lambda i: (i, 0)),
        ),
        compiler_params=pltpu.CompilerParams(
            dimension_semantics=dim_sem,
            vmem_limit_bytes=vmem_limit,
        ),
    )(x, w_t, b)
    return out


def init_params(key):
    # Deterministic init mimicking nn.Linear default: U(-1/sqrt(fan_in), +bound).
    k_w, k_b = jax.random.split(key)
    bound = 1.0 / jnp.sqrt(jnp.float32(IN_FEATURES))
    # PyTorch weight is (out, in); store transposed (in, out) for the kernel matmul.
    w_t = jax.random.uniform(
        k_w, (IN_FEATURES, OUT_FEATURES), jnp.float32, -bound, bound
    )
    b = jax.random.uniform(k_b, (1, OUT_FEATURES), jnp.float32, -bound, bound)
    return w_t, b


if __name__ == "__main__":
    key = jax.random.PRNGKey(0)
    k_x, k_p, k_x2 = jax.random.split(key, 3)

    w_t, b = init_params(k_p)

    # Small-batch check (single ragged block: B=2 < 8-row sublane tile).
    B = 2
    x = jax.random.normal(k_x, (B, IN_FEATURES), jnp.float32)
    out = jax.block_until_ready(svm_forward(x, w_t, b))
    ref = x @ w_t + b
    assert out.shape == (B, OUT_FEATURES)
    assert jnp.allclose(out, ref, atol=1e-5, rtol=1e-5)

    # Multi-tile + ragged-last-block check (no wrapper padding any more).
    B2 = 300
    x2 = jax.random.normal(k_x2, (B2, IN_FEATURES), jnp.float32)
    out2 = jax.block_until_ready(svm_forward(x2, w_t, b, tile_b=128))
    ref2 = x2 @ w_t + b
    assert out2.shape == (B2, OUT_FEATURES)
    assert jnp.allclose(out2, ref2, atol=1e-4, rtol=1e-5)

    print("KERNEL_OK")
</pallas_src>

<mosaic_0001>
module attributes {stable_mosaic.version = 11 : i64} {
  func.func @svm_kernel(%arg0: i32, %arg1: memref<8x1024xf32, #tpu.memory_space<vmem>>, %arg2: memref<1024x1xf32, #tpu.memory_space<vmem>>, %arg3: memref<1x1xf32, #tpu.memory_space<smem>>, %arg4: memref<8x1xf32, #tpu.memory_space<vmem>>) attributes {dimension_semantics = [#tpu.dimension_semantics<parallel>], iteration_bounds = array<i64: 1>, scalar_prefetch = 0 : i64, scratch_operands = 0 : i64, tpu.core_type = #tpu.core_type<tc>, window_params = [{transform_indices = @transform_0, window_bounds = array<i64: 8, 1024>}, {pipeline_mode = #tpu.pipeline_mode<synchronous>, transform_indices = @transform_1, window_bounds = array<i64: 1024, 1>}, {transform_indices = @transform_2, window_bounds = array<i64: 1, 1>}, {transform_indices = @transform_3, window_bounds = array<i64: 8, 1>}]} {
    %c0 = arith.constant 0 : index
    %c0_0 = arith.constant 0 : index
    %0 = vector.load %arg1[%c0, %c0_0] : memref<8x1024xf32, #tpu.memory_space<vmem>>, vector<8x1024xf32>
    %c0_1 = arith.constant 0 : index
    %c0_2 = arith.constant 0 : index
    %1 = vector.load %arg2[%c0_1, %c0_2] : memref<1024x1xf32, #tpu.memory_space<vmem>>, vector<1024x1xf32>
    %cst = arith.constant dense<0.000000e+00> : vector<8x1xf32>
    %2 = tpu.matmul %0, %1, %cst {dimension_numbers = #tpu.dot_dimension_numbers<[1], [0], [0], [1], [0, 0, 1, 1], [], []>} : vector<8x1024xf32>, vector<1024x1xf32>, vector<8x1xf32> -> vector<8x1xf32>
    %c0_3 = arith.constant 0 : index
    %c0_4 = arith.constant 0 : index
    %3 = memref.load %arg3[%c0_3, %c0_4] : memref<1x1xf32, #tpu.memory_space<smem>>
    %4 = vector.broadcast %3 : f32 to vector<8x1xf32>
    %5 = arith.addf %2, %4 : vector<8x1xf32>
    %c0_5 = arith.constant 0 : index
    %c0_6 = arith.constant 0 : index
    %6 = vector.load %arg4[%c0_5, %c0_6] : memref<8x1xf32, #tpu.memory_space<vmem>>, vector<8x1xf32>
    tpu.vector_store %arg4[%c0_5, %c0_6], %5 {strides = array<i32>} : memref<8x1xf32, #tpu.memory_space<vmem>>, vector<8x1xf32>,
    return
  }
  func.func @transform_0(%arg0: i32) -> (i32, i32) {
    %c0_i32 = arith.constant 0 : i32
    %c0_i32_0 = arith.constant 0 : i32
    return %arg0, %c0_i32 : i32, i32
  }
  func.func @transform_1(%arg0: i32) -> (i32, i32) {
    %c0_i32 = arith.constant 0 : i32
    %c0_i32_0 = arith.constant 0 : i32
    %c0_i32_1 = arith.constant 0 : i32
    return %c0_i32, %c0_i32_0 : i32, i32
  }
  func.func @transform_2(%arg0: i32) -> (i32, i32) {
    %c0_i32 = arith.constant 0 : i32
    %c0_i32_0 = arith.constant 0 : i32
    %c0_i32_1 = arith.constant 0 : i32
    return %c0_i32, %c0_i32_0 : i32, i32
  }
  func.func @transform_3(%arg0: i32) -> (i32, i32) {
    %c0_i32 = arith.constant 0 : i32
    %c0_i32_0 = arith.constant 0 : i32
    return %arg0, %c0_i32 : i32, i32
  }
}

</mosaic_0001>

<llo_original>
// kernel: tpu_custom_call.1
$region0: #{tpu_custom_call.1}
  #allocation0 [shape = 'u32[]', space=smem, size = 0x4, offset = 0x4, fixed_abs, tag = 'smem constant byte address 0x4 - core index']
  #allocation1 [shape = 'u32[72,128]{1,0:T(1,128)}', space=vmem, size = 0x9000, scoped, tag = 'internal scratch']
  #allocation2 [shape = 'f32[1,1]{1,0:T(1,128)S(6)}', space=smem, size = 0x200, scoped, tag = 'scoped memory for tpu_custom_call.1']
  %s0 = inlined_call_operand.vmem [shape: f32[2,1024], index: 0, kind: input, shape index: {}]
  %s1 = inlined_call_operand.vmem [shape: f32[1024,1], index: 1, kind: input, shape index: {}]
  %s2 = inlined_call_operand.<no memory space> [shape: f32[1,1], index: 2, kind: input, shape index: {}]
  %s3 = inlined_call_operand.vmem [shape: f32[2,1], index: 3, kind: output, shape index: {}]
  %s4 = sld [smem:[#allocation0]]
  $region52: #{tpu_custom_call.1} parent=0
    _
  %s6 = ssub.s32 1, %s4
  %s7 = scalar_select 0, %s6, %s4
  %8 = sst [smem:[#allocation2]] %s2
  $region1: #{tpu_custom_call.1} parent=0
    #allocation3 [shape = 'u8[4096]{0}', space=vmem, size = 0x1000, scoped, tag = 'output window, operand 0, single buffered']
    // Predicated region
    $region2: #{tpu_custom_call.1} parent=1 // pred_check
      _
    $region3: #{tpu_custom_call.1} parent=1 // pred_check_branch
      %10 = sbr.rel (0) target = $region5
    $region4: #{tpu_custom_call.1} parent=1 // pred_region
      _
    $region5: #{tpu_custom_call.1} parent=1 // pred_fallthru
      _
    // Predicated region
    $region6: #{tpu_custom_call.1} parent=1 // pred_check
      _
    $region7: #{tpu_custom_call.1} parent=1 // pred_check_branch
      %12 = sbr.rel (0) target = $region9
    $region8: #{tpu_custom_call.1} parent=1 // pred_region
      _
    $region9: #{tpu_custom_call.1} parent=1 // pred_fallthru
      _
    // Predicated region
    $region10: #{tpu_custom_call.1} parent=1 // pred_check
      _
    $region11: #{tpu_custom_call.1} parent=1 // pred_check_branch
      %14 = sbr.rel (0) target = $region13
    $region12: #{tpu_custom_call.1} parent=1 // pred_region
      _
    $region13: #{tpu_custom_call.1} parent=1 // pred_fallthru
      _
    %v15 = vld [vmem:[%s0] sm:$0xff]
    %v16 = vld [vmem:[%s0 + $0x8] sm:$0xff]
    %v17 = vld [vmem:[%s0 + $0x10] sm:$0xff]
    %v18 = vld [vmem:[%s0 + $0x18] sm:$0xff]
    %v19 = vld [vmem:[%s0 + $0x20] sm:$0xff]
    %v20 = vld [vmem:[%s0 + $0x28] sm:$0xff]
    %v21 = vld [vmem:[%s0 + $0x30] sm:$0xff]
    %v22 = vld [vmem:[%s0 + $0x38] sm:$0xff]
    %v23 = vld [vmem:[%s1] sm:$0xff]
    %v24 = vld [vmem:[%s1 + $0x8] sm:$0xff]
    %v25 = vld [vmem:[%s1 + $0x10] sm:$0xff]
    %v26 = vld [vmem:[%s1 + $0x18] sm:$0xff]
    %v27 = vld [vmem:[%s1 + $0x20] sm:$0xff]
    %v28 = vld [vmem:[%s1 + $0x28] sm:$0xff]
    %v29 = vld [vmem:[%s1 + $0x30] sm:$0xff]
    %v30 = vld [vmem:[%s1 + $0x38] sm:$0xff]
    %v31 = vld [vmem:[%s1 + $0x40] sm:$0xff]
    %v32 = vld [vmem:[%s1 + $0x48] sm:$0xff]
    %v33 = vld [vmem:[%s1 + $0x50] sm:$0xff]
    %v34 = vld [vmem:[%s1 + $0x58] sm:$0xff]
    %v35 = vld [vmem:[%s1 + $0x60] sm:$0xff]
    %v36 = vld [vmem:[%s1 + $0x68] sm:$0xff]
    %v37 = vld [vmem:[%s1 + $0x70] sm:$0xff]
    %v38 = vld [vmem:[%s1 + $0x78] sm:$0xff]
    %v39 = vld [vmem:[%s1 + $0x80] sm:$0xff]
    %v40 = vld [vmem:[%s1 + $0x88] sm:$0xff]
    %v41 = vld [vmem:[%s1 + $0x90] sm:$0xff]
    %v42 = vld [vmem:[%s1 + $0x98] sm:$0xff]
    %v43 = vld [vmem:[%s1 + $0xa0] sm:$0xff]
    %v44 = vld [vmem:[%s1 + $0xa8] sm:$0xff]
    %v45 = vld [vmem:[%s1 + $0xb0] sm:$0xff]
    %v46 = vld [vmem:[%s1 + $0xb8] sm:$0xff]
    %v47 = vld [vmem:[%s1 + $0xc0] sm:$0xff]
    %v48 = vld [vmem:[%s1 + $0xc8] sm:$0xff]
    %v49 = vld [vmem:[%s1 + $0xd0] sm:$0xff]
    %v50 = vld [vmem:[%s1 + $0xd8] sm:$0xff]
    %v51 = vld [vmem:[%s1 + $0xe0] sm:$0xff]
    %v52 = vld [vmem:[%s1 + $0xe8] sm:$0xff]
    %v53 = vld [vmem:[%s1 + $0xf0] sm:$0xff]
    %v54 = vld [vmem:[%s1 + $0xf8] sm:$0xff]
    %v55 = vld [vmem:[%s1 + $0x100] sm:$0xff]
    %v56 = vld [vmem:[%s1 + $0x108] sm:$0xff]
    %v57 = vld [vmem:[%s1 + $0x110] sm:$0xff]
    %v58 = vld [vmem:[%s1 + $0x118] sm:$0xff]
    %v59 = vld [vmem:[%s1 + $0x120] sm:$0xff]
    %v60 = vld [vmem:[%s1 + $0x128] sm:$0xff]
    %v61 = vld [vmem:[%s1 + $0x130] sm:$0xff]
    %v62 = vld [vmem:[%s1 + $0x138] sm:$0xff]
    %v63 = vld [vmem:[%s1 + $0x140] sm:$0xff]
    %v64 = vld [vmem:[%s1 + $0x148] sm:$0xff]
    %v65 = vld [vmem:[%s1 + $0x150] sm:$0xff]
    %v66 = vld [vmem:[%s1 + $0x158] sm:$0xff]
    %v67 = vld [vmem:[%s1 + $0x160] sm:$0xff]
    %v68 = vld [vmem:[%s1 + $0x168] sm:$0xff]
    %v69 = vld [vmem:[%s1 + $0x170] sm:$0xff]
    %v70 = vld [vmem:[%s1 + $0x178] sm:$0xff]
    %v71 = vld [vmem:[%s1 + $0x180] sm:$0xff]
    %v72 = vld [vmem:[%s1 + $0x188] sm:$0xff]
    %v73 = vld [vmem:[%s1 + $0x190] sm:$0xff]
    %v74 = vld [vmem:[%s1 + $0x198] sm:$0xff]
    %v75 = vld [vmem:[%s1 + $0x1a0] sm:$0xff]
    %v76 = vld [vmem:[%s1 + $0x1a8] sm:$0xff]
    %v77 = vld [vmem:[%s1 + $0x1b0] sm:$0xff]
    %v78 = vld [vmem:[%s1 + $0x1b8] sm:$0xff]
    %v79 = vld [vmem:[%s1 + $0x1c0] sm:$0xff]
    %v80 = vld [vmem:[%s1 + $0x1c8] sm:$0xff]
    %v81 = vld [vmem:[%s1 + $0x1d0] sm:$0xff]
    %v82 = vld [vmem:[%s1 + $0x1d8] sm:$0xff]
    %v83 = vld [vmem:[%s1 + $0x1e0] sm:$0xff]
    %v84 = vld [vmem:[%s1 + $0x1e8] sm:$0xff]
    %v85 = vld [vmem:[%s1 + $0x1f0] sm:$0xff]
    %v86 = vld [vmem:[%s1 + $0x1f8] sm:$0xff]
    %v87 = vld [vmem:[%s1 + $0x200] sm:$0xff]
    %v88 = vld [vmem:[%s1 + $0x208] sm:$0xff]
    %v89 = vld [vmem:[%s1 + $0x210] sm:$0xff]
    %v90 = vld [vmem:[%s1 + $0x218] sm:$0xff]
    %v91 = vld [vmem:[%s1 + $0x220] sm:$0xff]
    %v92 = vld [vmem:[%s1 + $0x228] sm:$0xff]
    %v93 = vld [vmem:[%s1 + $0x230] sm:$0xff]
    %v94 = vld [vmem:[%s1 + $0x238] sm:$0xff]
    %v95 = vld [vmem:[%s1 + $0x240] sm:$0xff]
    %v96 = vld [vmem:[%s1 + $0x248] sm:$0xff]
    %v97 = vld [vmem:[%s1 + $0x250] sm:$0xff]
    %v98 = vld [vmem:[%s1 + $0x258] sm:$0xff]
    %v99 = vld [vmem:[%s1 + $0x260] sm:$0xff]
    %v100 = vld [vmem:[%s1 + $0x268] sm:$0xff]
    %v101 = vld [vmem:[%s1 + $0x270] sm:$0xff]
    %v102 = vld [vmem:[%s1 + $0x278] sm:$0xff]
    %v103 = vld [vmem:[%s1 + $0x280] sm:$0xff]
    %v104 = vld [vmem:[%s1 + $0x288] sm:$0xff]
    %v105 = vld [vmem:[%s1 + $0x290] sm:$0xff]
    %v106 = vld [vmem:[%s1 + $0x298] sm:$0xff]
    %v107 = vld [vmem:[%s1 + $0x2a0] sm:$0xff]
    %v108 = vld [vmem:[%s1 + $0x2a8] sm:$0xff]
    %v109 = vld [vmem:[%s1 + $0x2b0] sm:$0xff]
    %v110 = vld [vmem:[%s1 + $0x2b8] sm:$0xff]
    %v111 = vld [vmem:[%s1 + $0x2c0] sm:$0xff]
    %v112 = vld [vmem:[%s1 + $0x2c8] sm:$0xff]
    %v113 = vld [vmem:[%s1 + $0x2d0] sm:$0xff]
    %v114 = vld [vmem:[%s1 + $0x2d8] sm:$0xff]
    %v115 = vld [vmem:[%s1 + $0x2e0] sm:$0xff]
    %v116 = vld [vmem:[%s1 + $0x2e8] sm:$0xff]
    %v117 = vld [vmem:[%s1 + $0x2f0] sm:$0xff]
    %v118 = vld [vmem:[%s1 + $0x2f8] sm:$0xff]
    %v119 = vld [vmem:[%s1 + $0x300] sm:$0xff]
    %v120 = vld [vmem:[%s1 + $0x308] sm:$0xff]
    %v121 = vld [vmem:[%s1 + $0x310] sm:$0xff]
    %v122 = vld [vmem:[%s1 + $0x318] sm:$0xff]
    %v123 = vld [vmem:[%s1 + $0x320] sm:$0xff]
    %v124 = vld [vmem:[%s1 + $0x328] sm:$0xff]
    %v125 = vld [vmem:[%s1 + $0x330] sm:$0xff]
    %v126 = vld [vmem:[%s1 + $0x338] sm:$0xff]
    %v127 = vld [vmem:[%s1 + $0x340] sm:$0xff]
    %v128 = vld [vmem:[%s1 + $0x348] sm:$0xff]
    %v129 = vld [vmem:[%s1 + $0x350] sm:$0xff]
    %v130 = vld [vmem:[%s1 + $0x358] sm:$0xff]
    %v131 = vld [vmem:[%s1 + $0x360] sm:$0xff]
    %v132 = vld [vmem:[%s1 + $0x368] sm:$0xff]
    %v133 = vld [vmem:[%s1 + $0x370] sm:$0xff]
    %v134 = vld [vmem:[%s1 + $0x378] sm:$0xff]
    %v135 = vld [vmem:[%s1 + $0x380] sm:$0xff]
    %v136 = vld [vmem:[%s1 + $0x388] sm:$0xff]
    %v137 = vld [vmem:[%s1 + $0x390] sm:$0xff]
    %v138 = vld [vmem:[%s1 + $0x398] sm:$0xff]
    %v139 = vld [vmem:[%s1 + $0x3a0] sm:$0xff]
    %v140 = vld [vmem:[%s1 + $0x3a8] sm:$0xff]
    %v141 = vld [vmem:[%s1 + $0x3b0] sm:$0xff]
    %v142 = vld [vmem:[%s1 + $0x3b8] sm:$0xff]
    %v143 = vld [vmem:[%s1 + $0x3c0] sm:$0xff]
    %v144 = vld [vmem:[%s1 + $0x3c8] sm:$0xff]
    %v145 = vld [vmem:[%s1 + $0x3d0] sm:$0xff]
    %v146 = vld [vmem:[%s1 + $0x3d8] sm:$0xff]
    %v147 = vld [vmem:[%s1 + $0x3e0] sm:$0xff]
    %v148 = vld [vmem:[%s1 + $0x3e8] sm:$0xff]
    %v149 = vld [vmem:[%s1 + $0x3f0] sm:$0xff]
    %v150 = vld [vmem:[%s1 + $0x3f8] sm:$0xff]
    %s151 = sld [smem:[#allocation2]]
    %v152 = vstv %s151
    %161 = vst [vmem:[#allocation1] ss:$4 sm:$0xff] %v15
    %s162 = scalar_lea.vmem [#allocation1], 1
    %163 = vst [vmem:[%s162] ss:$4 sm:$0xff] %v17
    %s164 = scalar_lea.vmem [#allocation1], 2
    %165 = vst [vmem:[%s164] ss:$4 sm:$0xff] %v19
    %s166 = scalar_lea.vmem [#allocation1], 3
    %167 = vst [vmem:[%s166] ss:$4 sm:$0xff] %v21
    %s168 = scalar_lea.vmem [#allocation1], 32
    %169 = vst [vmem:[%s168] ss:$4 sm:$0xff] %v16
    %s170 = scalar_lea.vmem [#allocation1], 33
    %171 = vst [vmem:[%s170] ss:$4 sm:$0xff] %v18
    %s172 = scalar_lea.vmem [#allocation1], 34
    %173 = vst [vmem:[%s172] ss:$4 sm:$0xff] %v20
    %s174 = scalar_lea.vmem [#allocation1], 35
    %175 = vst [vmem:[%s174] ss:$4 sm:$0xff] %v22
    %v176 = vld.sshfl [vmem:[#allocation1] sm:$0xff pattern:$0x73625140]
    %v177 = vld.sshfl [vmem:[#allocation1 + $0x8] sm:$0xff pattern:$0x73625140]
    %v178 = vld.sshfl [vmem:[#allocation1 + $0x10] sm:$0xff pattern:$0x73625140]
    %v179 = vld.sshfl [vmem:[#allocation1 + $0x18] sm:$0xff pattern:$0x73625140]
    %v180 = vld.sshfl [vmem:[#allocation1 + $0x20] sm:$0xff pattern:$0x73625140]
    %v181 = vld.sshfl [vmem:[#allocation1 + $0x28] sm:$0xff pattern:$0x73625140]
    %v182 = vld.sshfl [vmem:[#allocation1 + $0x30] sm:$0xff pattern:$0x73625140]
    %v183 = vld.sshfl [vmem:[#allocation1 + $0x38] sm:$0xff pattern:$0x73625140]
    %192 = vmatpush.msra.mxu0 %v38
    %193 = vmatpush.msra.mxu0 %v37
    %194 = vmatpush.msra.mxu0 %v36
    %195 = vmatpush.msra.mxu0 %v35
    %196 = vmatpush.msra.mxu0 %v34
    %197 = vmatpush.msra.mxu0 %v33
    %198 = vmatpush.msra.mxu0 %v32
    %199 = vmatpush.msra.mxu0 %v31
    %200 = vmatpush.msra.mxu0 %v30
    %201 = vmatpush.msra.mxu0 %v29
    %202 = vmatpush.msra.mxu0 %v28
    %203 = vmatpush.msra.mxu0 %v27
    %204 = vmatpush.msra.mxu0 %v26
    %205 = vmatpush.msra.mxu0 %v25
    %206 = vmatpush.msra.mxu0 %v24
    %207 = vmatpush.msra.mxu0 %v23
    %208 = vmatmul.f32.gmra.mxu0 %v176
    %v209 = vpop.f32.mrf.mxu0
    %v210 = vadd.f32 %v152, %v209
    %211 = vdwg.mxu0
    %212 = vmatpush.msra.mxu0 %v54
    %213 = vmatpush.msra.mxu0 %v53
    %214 = vmatpush.msra.mxu0 %v52
    %215 = vmatpush.msra.mxu0 %v51
    %216 = vmatpush.msra.mxu0 %v50
    %217 = vmatpush.msra.mxu0 %v49
    %218 = vmatpush.msra.mxu0 %v48
    %219 = vmatpush.msra.mxu0 %v47
    %220 = vmatpush.msra.mxu0 %v46
    %221 = vmatpush.msra.mxu0 %v45
    %222 = vmatpush.msra.mxu0 %v44
    %223 = vmatpush.msra.mxu0 %v43
    %224 = vmatpush.msra.mxu0 %v42
    %225 = vmatpush.msra.mxu0 %v41
    %226 = vmatpush.msra.mxu0 %v40
    %227 = vmatpush.msra.mxu0 %v39
    %228 = vmatmul.f32.gmra.mxu0 %v177
    %v229 = vpop.f32.mrf.mxu0
    %v230 = vadd.f32 %v210, %v229
    %231 = vdwg.mxu0
    %232 = vmatpush.msra.mxu0 %v70
    %233 = vmatpush.msra.mxu0 %v69
    %234 = vmatpush.msra.mxu0 %v68
    %235 = vmatpush.msra.mxu0 %v67
    %236 = vmatpush.msra.mxu0 %v66
    %237 = vmatpush.msra.mxu0 %v65
    %238 = vmatpush.msra.mxu0 %v64
    %239 = vmatpush.msra.mxu0 %v63
    %240 = vmatpush.msra.mxu0 %v62
    %241 = vmatpush.msra.mxu0 %v61
    %242 = vmatpush.msra.mxu0 %v60
    %243 = vmatpush.msra.mxu0 %v59
    %244 = vmatpush.msra.mxu0 %v58
    %245 = vmatpush.msra.mxu0 %v57
    %246 = vmatpush.msra.mxu0 %v56
    %247 = vmatpush.msra.mxu0 %v55
    %248 = vmatmul.f32.gmra.mxu0 %v178
    %v249 = vpop.f32.mrf.mxu0
    %v250 = vadd.f32 %v230, %v249
    %251 = vdwg.mxu0
    %252 = vmatpush.msra.mxu0 %v86
    %253 = vmatpush.msra.mxu0 %v85
    %254 = vmatpush.msra.mxu0 %v84
    %255 = vmatpush.msra.mxu0 %v83
    %256 = vmatpush.msra.mxu0 %v82
    %257 = vmatpush.msra.mxu0 %v81
    %258 = vmatpush.msra.mxu0 %v80
    %259 = vmatpush.msra.mxu0 %v79
    %260 = vmatpush.msra.mxu0 %v78
    %261 = vmatpush.msra.mxu0 %v77
    %262 = vmatpush.msra.mxu0 %v76
    %263 = vmatpush.msra.mxu0 %v75
    %264 = vmatpush.msra.mxu0 %v74
    %265 = vmatpush.msra.mxu0 %v73
    %266 = vmatpush.msra.mxu0 %v72
    %267 = vmatpush.msra.mxu0 %v71
    %268 = vmatmul.f32.gmra.mxu0 %v179
    %v269 = vpop.f32.mrf.mxu0
    %v270 = vadd.f32 %v250, %v269
    %271 = vdwg.mxu0
    %272 = vmatpush.msra.mxu0 %v102
    %273 = vmatpush.msra.mxu0 %v101
    %274 = vmatpush.msra.mxu0 %v100
    %275 = vmatpush.msra.mxu0 %v99
    %276 = vmatpush.msra.mxu0 %v98
    %277 = vmatpush.msra.mxu0 %v97
    %278 = vmatpush.msra.mxu0 %v96
    %279 = vmatpush.msra.mxu0 %v95
    %280 = vmatpush.msra.mxu0 %v94
    %281 = vmatpush.msra.mxu0 %v93
    %282 = vmatpush.msra.mxu0 %v92
    %283 = vmatpush.msra.mxu0 %v91
    %284 = vmatpush.msra.mxu0 %v90
    %285 = vmatpush.msra.mxu0 %v89
    %286 = vmatpush.msra.mxu0 %v88
    %287 = vmatpush.msra.mxu0 %v87
    %288 = vmatmul.f32.gmra.mxu0 %v180
    %v289 = vpop.f32.mrf.mxu0
    %v290 = vadd.f32 %v270, %v289
    %291 = vdwg.mxu0
    %292 = vmatpush.msra.mxu0 %v118
    %293 = vmatpush.msra.mxu0 %v117
    %294 = vmatpush.msra.mxu0 %v116
    %295 = vmatpush.msra.mxu0 %v115
    %296 = vmatpush.msra.mxu0 %v114
    %297 = vmatpush.msra.mxu0 %v113
    %298 = vmatpush.msra.mxu0 %v112
    %299 = vmatpush.msra.mxu0 %v111
    %300 = vmatpush.msra.mxu0 %v110
    %301 = vmatpush.msra.mxu0 %v109
    %302 = vmatpush.msra.mxu0 %v108
    %303 = vmatpush.msra.mxu0 %v107
    %304 = vmatpush.msra.mxu0 %v106
    %305 = vmatpush.msra.mxu0 %v105
    %306 = vmatpush.msra.mxu0 %v104
    %307 = vmatpush.msra.mxu0 %v103
    %308 = vmatmul.f32.gmra.mxu0 %v181
    %v309 = vpop.f32.mrf.mxu0
    %v310 = vadd.f32 %v290, %v309
    %311 = vdwg.mxu0
    %312 = vmatpush.msra.mxu0 %v134
    %313 = vmatpush.msra.mxu0 %v133
    %314 = vmatpush.msra.mxu0 %v132
    %315 = vmatpush.msra.mxu0 %v131
    %316 = vmatpush.msra.mxu0 %v130
    %317 = vmatpush.msra.mxu0 %v129
    %318 = vmatpush.msra.mxu0 %v128
    %319 = vmatpush.msra.mxu0 %v127
    %320 = vmatpush.msra.mxu0 %v126
    %321 = vmatpush.msra.mxu0 %v125
    %322 = vmatpush.msra.mxu0 %v124
    %323 = vmatpush.msra.mxu0 %v123
    %324 = vmatpush.msra.mxu0 %v122
    %325 = vmatpush.msra.mxu0 %v121
    %326 = vmatpush.msra.mxu0 %v120
    %327 = vmatpush.msra.mxu0 %v119
    %328 = vmatmul.f32.gmra.mxu0 %v182
    %v329 = vpop.f32.mrf.mxu0
    %v330 = vadd.f32 %v310, %v329
    %331 = vdwg.mxu0
    %332 = vmatpush.msra.mxu0 %v150
    %333 = vmatpush.msra.mxu0 %v149
    %334 = vmatpush.msra.mxu0 %v148
    %335 = vmatpush.msra.mxu0 %v147
    %336 = vmatpush.msra.mxu0 %v146
    %337 = vmatpush.msra.mxu0 %v145
    %338 = vmatpush.msra.mxu0 %v144
    %339 = vmatpush.msra.mxu0 %v143
    %340 = vmatpush.msra.mxu0 %v142
    %341 = vmatpush.msra.mxu0 %v141
    %342 = vmatpush.msra.mxu0 %v140
    %343 = vmatpush.msra.mxu0 %v139
    %344 = vmatpush.msra.mxu0 %v138
    %345 = vmatpush.msra.mxu0 %v137
    %346 = vmatpush.msra.mxu0 %v136
    %347 = vmatpush.msra.mxu0 %v135
    %348 = vmatmul.f32.gmra.mxu0 %v183
    %v349 = vpop.f32.mrf.mxu0
    %v350 = vadd.f32 %v330, %v349
    %351 = vdwg.mxu0
    %vm352 = vcmask 7168
    %353 = vst.msk [vmem:[#allocation3] sm:$0xff] %vm352, %v350
    // Predicated region
    $region14: #{tpu_custom_call.1} parent=1 // pred_check
      _
    $region15: #{tpu_custom_call.1} parent=1 // pred_check_branch
      %355 = sbr.rel (0) target = $region17
    $region16: #{tpu_custom_call.1} parent=1 // pred_region
      // Predicated region
      $region18: #{tpu_custom_call.1} parent=16 // pred_check
        _
      $region19: #{tpu_custom_call.1} parent=16 // pred_check_branch
        %357 = sbr.rel (0) target = $region21
      $region20: #{tpu_custom_call.1} parent=16 // pred_region
        // Predicated region
        $region22: #{tpu_custom_call.1} parent=20 // pred_check
          _
        $region23: #{tpu_custom_call.1} parent=20 // pred_check_branch
          %359 = sbr.rel target = $region25
        $region24: #{tpu_custom_call.1} parent=20 // pred_region
          // Predicated region
          $region37: #{tpu_custom_call.1} parent=24 // pred_check
            _
          $region38: #{tpu_custom_call.1} parent=24 // pred_check_branch
            %375 = sbr.rel (0) target = $region40
          $region39: #{tpu_custom_call.1} parent=24 // pred_region
            %s377 = ssub.s32 4, 1
            loop: start=0, step=1, limit=1
            $region41: #{tpu_custom_call.1} parent=39 // loop_pre_header
              _
            $region42: #{tpu_custom_call.1} parent=39 // loop_header
              %s379 = sphi 0, %s383
              %p380 = scmp.ge.s32.totalorder %s379, 1
              %s384 = sphi [#allocation3], [#allocation3]
              %s385 = sphi %s3, %s3
            $region43: #{tpu_custom_call.1} parent=39 // loop_header_branch
              %382 = sbr.rel (%p380) target = $region47
            $region44: #{tpu_custom_call.1} parent=39 // loop_body
              %v386 = vld [vmem:[%s384] sm:%s377]
              %387 = vst [vmem:[%s385] sm:%s377] %v386
            $region45: #{tpu_custom_call.1} parent=39 // loop_footer
              %s383 = sadd.s32 1, %s379
            $region46: #{tpu_custom_call.1} parent=39 // loop_footer_branch
              %378 = sbr.rel target = $region42
            $region47: #{tpu_custom_call.1} parent=39 // loop_exit
              _
          $region40: #{tpu_custom_call.1} parent=24 // pred_fallthru
            _
        $region25: #{tpu_custom_call.1} parent=20 // pred_fallthru
          _
        // Predicated region
        $region26: #{tpu_custom_call.1} parent=20 // pred_check
          _
        $region27: #{tpu_custom_call.1} parent=20 // pred_check_branch
          %361 = sbr.rel (0) target = $region29
        $region28: #{tpu_custom_call.1} parent=20 // pred_region
          %s363 = ssub.s32 4, 1
          loop: start=0, step=1, limit=1
          $region30: #{tpu_custom_call.1} parent=28 // loop_pre_header
            _
          $region31: #{tpu_custom_call.1} parent=28 // loop_header
            %s365 = sphi 0, %s369
            %p366 = scmp.ge.s32.totalorder %s365, 1
            %s370 = sphi [#allocation3], [#allocation3]
            %s371 = sphi %s3, %s3
          $region32: #{tpu_custom_call.1} parent=28 // loop_header_branch
            %368 = sbr.rel (%p366) target = $region36
          $region33: #{tpu_custom_call.1} parent=28 // loop_body
            %v372 = vld [vmem:[%s370] sm:%s363]
            %373 = vst [vmem:[%s371] sm:%s363] %v372
          $region34: #{tpu_custom_call.1} parent=28 // loop_footer
            %s369 = sadd.s32 1, %s365
          $region35: #{tpu_custom_call.1} parent=28 // loop_footer_branch
            %364 = sbr.rel target = $region31
          $region36: #{tpu_custom_call.1} parent=28 // loop_exit
            _
        $region29: #{tpu_custom_call.1} parent=20 // pred_fallthru
          _
      $region21: #{tpu_custom_call.1} parent=16 // pred_fallthru
        _
      %388 = vnop
    $region17: #{tpu_custom_call.1} parent=1 // pred_fallthru
      _
    // Predicated region
    $region48: #{tpu_custom_call.1} parent=1 // pred_check
      _
    $region49: #{tpu_custom_call.1} parent=1 // pred_check_branch
      %390 = sbr.rel (0) target = $region51
    $region50: #{tpu_custom_call.1} parent=1 // pred_region
      _
    $region51: #{tpu_custom_call.1} parent=1 // pred_fallthru
      _

</llo_original>
